<compile_context>
chip_gen: v5e
topology: v5e:2x2
jax: 0.10.0
libtpu: 0.0.40
codegen_flags: <defaults>
</compile_context>

<pallas_src>
import jax
import jax.numpy as jnp
from jax.experimental import pallas as pl
from jax.experimental.pallas import tpu as pltpu


def _mlp_residual_kernel(xT_ref, w1_ref, b1_ref, w2_ref, b2_ref,
                         w3_ref, ws_ref, b3s_ref, outT_ref):
    # All activations are (features, tm): batch on lanes, features on sublanes.
    xT = xT_ref[...]                                                  # (din, tm)

    h = jnp.dot(w1_ref[...], xT, preferred_element_type=jnp.float32)  # (hid, tm)
    h = jnp.maximum(h + b1_ref[...], 0.0)
    h = jnp.dot(w2_ref[...], h, preferred_element_type=jnp.float32)   # (hid, tm)
    h = jnp.maximum(h + b2_ref[...], 0.0)

    y = jnp.dot(w3_ref[...], h, preferred_element_type=jnp.float32)   # (dout, tm)
    # skip path + fused (b3 + b_skip) bias.  Dropout: identity (eval / p=0).
    y = y + jnp.dot(ws_ref[...], xT, preferred_element_type=jnp.float32)
    y = y + b3s_ref[...]

    outT_ref[...] = y.astype(outT_ref.dtype)


def _choose_tile(m, block_rows):
    """Pick the lane-dim tile: full extent for small M, else a multiple of 128
    capped so the grid has >=2 steps (v7x has 2 TensorCores)."""
    if m <= 2 * 128:
        return m                      # single block == full extent (always legal)
    half = (m // 2) // 128 * 128
    return max(128, min(block_rows, half))


def mlp_residual_block(x, w1, b1, w2, b2, w3, b3, ws, bs, *, block_rows=4096):
    """Forward pass of MLP_ResidualBlock.

    x: (..., input_dim).  Weights are in native PyTorch Linear layout
    (out_features, in_features); biases are (out_features,).
    """
    orig_shape = x.shape
    din = orig_shape[-1]
    hidden = w1.shape[0]
    dout = w3.shape[0]

    # Flatten batch and put it on the LAST (lane) axis: x^T is (din, m).
    x2d = x.reshape(-1, din)
    m = x2d.shape[0]
    xT = x2d.T                                       # (din, m)

    tm = _choose_tile(m, block_rows)
    pad = (-m) % tm
    if pad:
        xT = jnp.pad(xT, ((0, 0), (0, pad)))
    mp = m + pad
    grid = (mp // tm,)

    f32 = jnp.float32
    b1c = b1.astype(f32).reshape(hidden, 1)
    b2c = b2.astype(f32).reshape(hidden, 1)
    b3s = (b3.astype(f32) + bs.astype(f32)).reshape(dout, 1)  # fused output bias

    resident = lambda i: (0, 0)    # weights/biases: same block every step
    cols = lambda i: (0, i)        # activations: blocked over lane (batch) dim

    outT = pl.pallas_call(
        _mlp_residual_kernel,
        out_shape=jax.ShapeDtypeStruct((dout, mp), x.dtype),
        grid=grid,
        in_specs=[
            pl.BlockSpec((din, tm), cols),           # x^T columns
            pl.BlockSpec((hidden, din), resident),   # W1  (out, in)
            pl.BlockSpec((hidden, 1), resident),     # b1
            pl.BlockSpec((hidden, hidden), resident),# W2
            pl.BlockSpec((hidden, 1), resident),     # b2
            pl.BlockSpec((dout, hidden), resident),  # W3
            pl.BlockSpec((dout, din), resident),     # W_skip
            pl.BlockSpec((dout, 1), resident),       # b3 + b_skip
        ],
        out_specs=pl.BlockSpec((dout, tm), cols),
        compiler_params=pltpu.CompilerParams(
            dimension_semantics=("parallel",)),
    )(xT, w1, b1c, w2, b2c, w3, ws, b3s)

    if pad:
        outT = outT[:, :m]
    return outT.T.reshape(*orig_shape[:-1], dout)


def _ref_forward(x, w1, b1, w2, b2, w3, b3, ws, bs):
    """Pure-JAX reference matching the PyTorch module (eval-mode dropout)."""
    h = jax.nn.relu(x @ w1.T + b1)
    h = jax.nn.relu(h @ w2.T + b2)
    dense = h @ w3.T + b3
    skip = x @ ws.T + bs
    return dense + skip


if __name__ == "__main__":
    # Module config: input_dim=16, hidden_size=32, output_dim=16, dropout=0.0
    # (eval mode => identity).  Input x: (batch=2, seq=8, input_dim=16).
    B, S = 2, 8
    input_dim, hidden_size, output_dim = 16, 32, 16

    key = jax.random.PRNGKey(0)
    ks = jax.random.split(key, 9)

    def linear_init(kw, kb, fan_in, fan_out):
        # PyTorch Linear layout: weight (out_features, in_features).
        bound = 1.0 / (fan_in ** 0.5)
        w = jax.random.uniform(kw, (fan_out, fan_in), jnp.float32, -bound, bound)
        b = jax.random.uniform(kb, (fan_out,), jnp.float32, -bound, bound)
        return w, b

    w1, b1 = linear_init(ks[0], ks[1], input_dim, hidden_size)
    w2, b2 = linear_init(ks[2], ks[3], hidden_size, hidden_size)
    w3, b3 = linear_init(ks[4], ks[5], hidden_size, output_dim)
    ws, bs = linear_init(ks[6], ks[7], input_dim, output_dim)
    x = jax.random.normal(ks[8], (B, S, input_dim), jnp.float32)

    out = mlp_residual_block(x, w1, b1, w2, b2, w3, b3, ws, bs)
    out = jax.block_until_ready(out)

    ref = _ref_forward(x, w1, b1, w2, b2, w3, b3, ws, bs)
    assert out.shape == ref.shape, (out.shape, ref.shape)
    assert jnp.allclose(out, ref, atol=3e-5, rtol=1e-5), \
        float(jnp.max(jnp.abs(out - ref)))
    print("KERNEL_OK")
</pallas_src>

<mosaic_0001>
module attributes {stable_mosaic.version = 11 : i64} {
  func.func @_mlp_residual_kernel(%arg0: i32, %arg1: memref<16x16xf32, #tpu.memory_space<vmem>>, %arg2: memref<32x16xf32, #tpu.memory_space<vmem>>, %arg3: memref<32x1xf32, #tpu.memory_space<vmem>>, %arg4: memref<32x32xf32, #tpu.memory_space<vmem>>, %arg5: memref<32x1xf32, #tpu.memory_space<vmem>>, %arg6: memref<16x32xf32, #tpu.memory_space<vmem>>, %arg7: memref<16x16xf32, #tpu.memory_space<vmem>>, %arg8: memref<16x1xf32, #tpu.memory_space<vmem>>, %arg9: memref<16x16xf32, #tpu.memory_space<vmem>>) attributes {dimension_semantics = [#tpu.dimension_semantics<parallel>], iteration_bounds = array<i64: 1>, scalar_prefetch = 0 : i64, scratch_operands = 0 : i64, tpu.core_type = #tpu.core_type<tc>, window_params = [{transform_indices = @transform_0, window_bounds = array<i64: 16, 16>}, {pipeline_mode = #tpu.pipeline_mode<synchronous>, transform_indices = @transform_1, window_bounds = array<i64: 32, 16>}, {pipeline_mode = #tpu.pipeline_mode<synchronous>, transform_indices = @transform_2, window_bounds = array<i64: 32, 1>}, {pipeline_mode = #tpu.pipeline_mode<synchronous>, transform_indices = @transform_3, window_bounds = array<i64: 32, 32>}, {pipeline_mode = #tpu.pipeline_mode<synchronous>, transform_indices = @transform_4, window_bounds = array<i64: 32, 1>}, {pipeline_mode = #tpu.pipeline_mode<synchronous>, transform_indices = @transform_5, window_bounds = array<i64: 16, 32>}, {pipeline_mode = #tpu.pipeline_mode<synchronous>, transform_indices = @transform_6, window_bounds = array<i64: 16, 16>}, {pipeline_mode = #tpu.pipeline_mode<synchronous>, transform_indices = @transform_7, window_bounds = array<i64: 16, 1>}, {transform_indices = @transform_8, window_bounds = array<i64: 16, 16>}]} {
    %c0 = arith.constant 0 : index
    %c0_0 = arith.constant 0 : index
    %0 = vector.load %arg1[%c0, %c0_0] : memref<16x16xf32, #tpu.memory_space<vmem>>, vector<16x16xf32>
    %c0_1 = arith.constant 0 : index
    %c0_2 = arith.constant 0 : index
    %1 = vector.load %arg2[%c0_1, %c0_2] : memref<32x16xf32, #tpu.memory_space<vmem>>, vector<32x16xf32>
    %cst = arith.constant dense<0.000000e+00> : vector<32x16xf32>
    %2 = tpu.matmul %1, %0, %cst {dimension_numbers = #tpu.dot_dimension_numbers<[1], [0], [0], [1], [0, 0, 1, 1], [], []>} : vector<32x16xf32>, vector<16x16xf32>, vector<32x16xf32> -> vector<32x16xf32>
    %c0_3 = arith.constant 0 : index
    %c0_4 = arith.constant 0 : index
    %3 = vector.load %arg3[%c0_3, %c0_4] : memref<32x1xf32, #tpu.memory_space<vmem>>, vector<32x1xf32>
    %4 = vector.broadcast %3 : vector<32x1xf32> to vector<32x16xf32>
    %5 = arith.addf %2, %4 : vector<32x16xf32>
    %cst_5 = arith.constant 0.000000e+00 : f32
    %6 = vector.broadcast %cst_5 : f32 to vector<32x16xf32>
    %7 = arith.maximumf %5, %6 : vector<32x16xf32>
    %c0_6 = arith.constant 0 : index
    %c0_7 = arith.constant 0 : index
    %8 = vector.load %arg4[%c0_6, %c0_7] : memref<32x32xf32, #tpu.memory_space<vmem>>, vector<32x32xf32>
    %cst_8 = arith.constant dense<0.000000e+00> : vector<32x16xf32>
    %9 = tpu.matmul %8, %7, %cst_8 {dimension_numbers = #tpu.dot_dimension_numbers<[1], [0], [0], [1], [0, 0, 1, 1], [], []>} : vector<32x32xf32>, vector<32x16xf32>, vector<32x16xf32> -> vector<32x16xf32>
    %c0_9 = arith.constant 0 : index
    %c0_10 = arith.constant 0 : index
    %10 = vector.load %arg5[%c0_9, %c0_10] : memref<32x1xf32, #tpu.memory_space<vmem>>, vector<32x1xf32>
    %11 = vector.broadcast %10 : vector<32x1xf32> to vector<32x16xf32>
    %12 = arith.addf %9, %11 : vector<32x16xf32>
    %cst_11 = arith.constant 0.000000e+00 : f32
    %13 = vector.broadcast %cst_11 : f32 to vector<32x16xf32>
    %14 = arith.maximumf %12, %13 : vector<32x16xf32>
    %c0_12 = arith.constant 0 : index
    %c0_13 = arith.constant 0 : index
    %15 = vector.load %arg6[%c0_12, %c0_13] : memref<16x32xf32, #tpu.memory_space<vmem>>, vector<16x32xf32>
    %cst_14 = arith.constant dense<0.000000e+00> : vector<16x16xf32>
    %16 = tpu.matmul %15, %14, %cst_14 {dimension_numbers = #tpu.dot_dimension_numbers<[1], [0], [0], [1], [0, 0, 1, 1], [], []>} : vector<16x32xf32>, vector<32x16xf32>, vector<16x16xf32> -> vector<16x16xf32>
    %c0_15 = arith.constant 0 : index
    %c0_16 = arith.constant 0 : index
    %17 = vector.load %arg7[%c0_15, %c0_16] : memref<16x16xf32, #tpu.memory_space<vmem>>, vector<16x16xf32>
    %cst_17 = arith.constant dense<0.000000e+00> : vector<16x16xf32>
    %18 = tpu.matmul %17, %0, %cst_17 {dimension_numbers = #tpu.dot_dimension_numbers<[1], [0], [0], [1], [0, 0, 1, 1], [], []>} : vector<16x16xf32>, vector<16x16xf32>, vector<16x16xf32> -> vector<16x16xf32>
    %19 = arith.addf %16, %18 : vector<16x16xf32>
    %c0_18 = arith.constant 0 : index
    %c0_19 = arith.constant 0 : index
    %20 = vector.load %arg8[%c0_18, %c0_19] : memref<16x1xf32, #tpu.memory_space<vmem>>, vector<16x1xf32>
    %21 = vector.broadcast %20 : vector<16x1xf32> to vector<16x16xf32>
    %22 = arith.addf %19, %21 : vector<16x16xf32>
    %c0_20 = arith.constant 0 : index
    %c0_21 = arith.constant 0 : index
    %23 = vector.load %arg9[%c0_20, %c0_21] : memref<16x16xf32, #tpu.memory_space<vmem>>, vector<16x16xf32>
    tpu.vector_store %arg9[%c0_20, %c0_21], %22 {strides = array<i32>} : memref<16x16xf32, #tpu.memory_space<vmem>>, vector<16x16xf32>,
    return
  }
  func.func @transform_0(%arg0: i32) -> (i32, i32) {
    %c0_i32 = arith.constant 0 : i32
    %c0_i32_0 = arith.constant 0 : i32
    return %c0_i32, %arg0 : i32, i32
  }
  func.func @transform_1(%arg0: i32) -> (i32, i32) {
    %c0_i32 = arith.constant 0 : i32
    %c0_i32_0 = arith.constant 0 : i32
    %c0_i32_1 = arith.constant 0 : i32
    return %c0_i32, %c0_i32_0 : i32, i32
  }
  func.func @transform_2(%arg0: i32) -> (i32, i32) {
    %c0_i32 = arith.constant 0 : i32
    %c0_i32_0 = arith.constant 0 : i32
    %c0_i32_1 = arith.constant 0 : i32
    return %c0_i32, %c0_i32_0 : i32, i32
  }
  func.func @transform_3(%arg0: i32) -> (i32, i32) {
    %c0_i32 = arith.constant 0 : i32
    %c0_i32_0 = arith.constant 0 : i32
    %c0_i32_1 = arith.constant 0 : i32
    return %c0_i32, %c0_i32_0 : i32, i32
  }
  func.func @transform_4(%arg0: i32) -> (i32, i32) {
    %c0_i32 = arith.constant 0 : i32
    %c0_i32_0 = arith.constant 0 : i32
    %c0_i32_1 = arith.constant 0 : i32
    return %c0_i32, %c0_i32_0 : i32, i32
  }
  func.func @transform_5(%arg0: i32) -> (i32, i32) {
    %c0_i32 = arith.constant 0 : i32
    %c0_i32_0 = arith.constant 0 : i32
    %c0_i32_1 = arith.constant 0 : i32
    return %c0_i32, %c0_i32_0 : i32, i32
  }
  func.func @transform_6(%arg0: i32) -> (i32, i32) {
    %c0_i32 = arith.constant 0 : i32
    %c0_i32_0 = arith.constant 0 : i32
    %c0_i32_1 = arith.constant 0 : i32
    return %c0_i32, %c0_i32_0 : i32, i32
  }
  func.func @transform_7(%arg0: i32) -> (i32, i32) {
    %c0_i32 = arith.constant 0 : i32
    %c0_i32_0 = arith.constant 0 : i32
    %c0_i32_1 = arith.constant 0 : i32
    return %c0_i32, %c0_i32_0 : i32, i32
  }
  func.func @transform_8(%arg0: i32) -> (i32, i32) {
    %c0_i32 = arith.constant 0 : i32
    %c0_i32_0 = arith.constant 0 : i32
    return %c0_i32, %arg0 : i32, i32
  }
}

</mosaic_0001>

<llo_original>
// kernel: tpu_custom_call.1
$region0: #{tpu_custom_call.1}
  #allocation0 [shape = 'u32[]', space=smem, size = 0x4, offset = 0x4, fixed_abs, tag = 'smem constant byte address 0x4 - core index']
  #allocation1 [shape = 'u32[72,128]{1,0:T(1,128)}', space=vmem, size = 0x9000, scoped, tag = 'internal scratch']
  %s0 = inlined_call_operand.vmem [shape: f32[16,16], index: 0, kind: input, shape index: {}]
  %s1 = inlined_call_operand.vmem [shape: f32[32,16], index: 1, kind: input, shape index: {}]
  %s2 = inlined_call_operand.vmem [shape: f32[32,1], index: 2, kind: input, shape index: {}]
  %s3 = inlined_call_operand.vmem [shape: f32[32,32], index: 3, kind: input, shape index: {}]
  %s4 = inlined_call_operand.vmem [shape: f32[32,1], index: 4, kind: input, shape index: {}]
  %s5 = inlined_call_operand.vmem [shape: f32[16,32], index: 5, kind: input, shape index: {}]
  %s6 = inlined_call_operand.vmem [shape: f32[16,16], index: 6, kind: input, shape index: {}]
  %s7 = inlined_call_operand.vmem [shape: f32[16,1], index: 7, kind: input, shape index: {}]
  %s8 = inlined_call_operand.hbm [shape: f32[16,16], index: 8, kind: output, shape index: {}]
  %s9 = sld [smem:[#allocation0]]
  $region42: #{tpu_custom_call.1} parent=0
    _
  %s11 = ssub.s32 1, %s9
  %s12 = scalar_select 0, %s11, %s9
  $region1: #{tpu_custom_call.1} parent=0
    #allocation2 [shape = 'u8[8192]{0}', space=vmem, size = 0x2000, scoped, tag = 'output window, operand 0, single buffered']
    #allocation3 [shape = 's32[1]{0}', space=sflag, size = 0x4, scoped, tag = 'scoped memory for tpu_custom_call.1']
    %13 = vsyncpa [#allocation3], 0
    // Predicated region
    $region2: #{tpu_custom_call.1} parent=1 // pred_check
      _
    $region3: #{tpu_custom_call.1} parent=1 // pred_check_branch
      %15 = sbr.rel (0) target = $region5
    $region4: #{tpu_custom_call.1} parent=1 // pred_region
      _
    $region5: #{tpu_custom_call.1} parent=1 // pred_fallthru
      _
    // Predicated region
    $region6: #{tpu_custom_call.1} parent=1 // pred_check
      _
    $region7: #{tpu_custom_call.1} parent=1 // pred_check_branch
      %17 = sbr.rel (0) target = $region9
    $region8: #{tpu_custom_call.1} parent=1 // pred_region
      _
    $region9: #{tpu_custom_call.1} parent=1 // pred_fallthru
      _
    // Predicated region
    $region10: #{tpu_custom_call.1} parent=1 // pred_check
      _
    $region11: #{tpu_custom_call.1} parent=1 // pred_check_branch
      %19 = sbr.rel (0) target = $region13
    $region12: #{tpu_custom_call.1} parent=1 // pred_region
      _
    $region13: #{tpu_custom_call.1} parent=1 // pred_fallthru
      _
    // Predicated region
    $region14: #{tpu_custom_call.1} parent=1 // pred_check
      _
    $region15: #{tpu_custom_call.1} parent=1 // pred_check_branch
      %21 = sbr.rel (0) target = $region17
    $region16: #{tpu_custom_call.1} parent=1 // pred_region
      _
    $region17: #{tpu_custom_call.1} parent=1 // pred_fallthru
      _
    // Predicated region
    $region18: #{tpu_custom_call.1} parent=1 // pred_check
      _
    $region19: #{tpu_custom_call.1} parent=1 // pred_check_branch
      %23 = sbr.rel (0) target = $region21
    $region20: #{tpu_custom_call.1} parent=1 // pred_region
      _
    $region21: #{tpu_custom_call.1} parent=1 // pred_fallthru
      _
    // Predicated region
    $region22: #{tpu_custom_call.1} parent=1 // pred_check
      _
    $region23: #{tpu_custom_call.1} parent=1 // pred_check_branch
      %25 = sbr.rel (0) target = $region25
    $region24: #{tpu_custom_call.1} parent=1 // pred_region
      _
    $region25: #{tpu_custom_call.1} parent=1 // pred_fallthru
      _
    // Predicated region
    $region26: #{tpu_custom_call.1} parent=1 // pred_check
      _
    $region27: #{tpu_custom_call.1} parent=1 // pred_check_branch
      %27 = sbr.rel (0) target = $region29
    $region28: #{tpu_custom_call.1} parent=1 // pred_region
      _
    $region29: #{tpu_custom_call.1} parent=1 // pred_fallthru
      _
    // Predicated region
    $region30: #{tpu_custom_call.1} parent=1 // pred_check
      _
    $region31: #{tpu_custom_call.1} parent=1 // pred_check_branch
      %29 = sbr.rel (0) target = $region33
    $region32: #{tpu_custom_call.1} parent=1 // pred_region
      _
    $region33: #{tpu_custom_call.1} parent=1 // pred_fallthru
      _
    %v30 = vld [vmem:[%s0] sm:$0xff]
    %v31 = vld [vmem:[%s0 + $0x8] sm:$0xff]
    %v32 = vld [vmem:[%s1] sm:$0xff]
    %v33 = vld [vmem:[%s1 + $0x8] sm:$0xff]
    %v34 = vld [vmem:[%s1 + $0x10] sm:$0xff]
    %v35 = vld [vmem:[%s1 + $0x18] sm:$0xff]
    %v36 = vld [vmem:[%s2] sm:$0xff]
    %v37 = vld [vmem:[%s2 + $0x8] sm:$0xff]
    %v38 = vld [vmem:[%s2 + $0x10] sm:$0xff]
    %v39 = vld [vmem:[%s2 + $0x18] sm:$0xff]
    %41 = vset.pattern.permute.xlu0 0
    %42 = vperm.xlu0 %41, %v36
    %v43 = vpop.permute.xlu0 %42
    %46 = vset.pattern.permute.xlu0 0
    %47 = vperm.xlu0 %46, %v37
    %v48 = vpop.permute.xlu0 %47
    %51 = vset.pattern.permute.xlu0 0
    %52 = vperm.xlu0 %51, %v38
    %v53 = vpop.permute.xlu0 %52
    %56 = vset.pattern.permute.xlu0 0
    %57 = vperm.xlu0 %56, %v39
    %v58 = vpop.permute.xlu0 %57
    %vm60 = vcmask 130048
    %v62 = vsel %vm60, %v32, 0
    %v65 = vsel %vm60, %v33, 0
    %v68 = vsel %vm60, %v34, 0
    %v71 = vsel %vm60, %v35, 0
    %73 = vmatpush.msra.mxu0 0.0
    %74 = vmatpush.msra.mxu0 0.0
    %75 = vmatpush.msra.mxu0 0.0
    %76 = vmatpush.msra.mxu0 0.0
    %77 = vmatpush.msra.mxu0 0.0
    %78 = vmatpush.msra.mxu0 0.0
    %79 = vmatpush.msra.mxu0 0.0
    %80 = vmatpush.msra.mxu0 0.0
    %81 = vmatpush.msra.mxu0 0.0
    %82 = vmatpush.msra.mxu0 0.0
    %83 = vmatpush.msra.mxu0 0.0
    %84 = vmatpush.msra.mxu0 0.0
    %85 = vmatpush.msra.mxu0 0.0
    %86 = vmatpush.msra.mxu0 0.0
    %87 = vmatpush.msra.mxu0 %v31
    %88 = vmatpush.msra.mxu0 %v30
    %89 = vmatmul.f32.gmra.mxu0 %v62
    %v90 = vpop.f32.mrf.mxu0
    %v91 = vadd.f32 %v43, %v90
    %92 = vmatmul.f32.gmra.mxu0 %v65
    %v93 = vpop.f32.mrf.mxu0
    %v94 = vadd.f32 %v48, %v93
    %95 = vmatmul.f32.gmra.mxu0 %v68
    %v96 = vpop.f32.mrf.mxu0
    %v97 = vadd.f32 %v53, %v96
    %98 = vmatmul.f32.gmra.mxu0 %v71
    %v99 = vpop.f32.mrf.mxu0
    %v100 = vadd.f32 %v58, %v99
    %101 = vdwg.mxu0
    %v102 = vmax.f32 %v91, 0.0
    %v103 = vmax.f32 %v94, 0.0
    %v104 = vmax.f32 %v97, 0.0
    %v105 = vmax.f32 %v100, 0.0
    %v106 = vld [vmem:[%s3] sm:$0xff]
    %v107 = vld [vmem:[%s3 + $0x8] sm:$0xff]
    %v108 = vld [vmem:[%s3 + $0x10] sm:$0xff]
    %v109 = vld [vmem:[%s3 + $0x18] sm:$0xff]
    %v110 = vld [vmem:[%s4] sm:$0xff]
    %v111 = vld [vmem:[%s4 + $0x8] sm:$0xff]
    %v112 = vld [vmem:[%s4 + $0x10] sm:$0xff]
    %v113 = vld [vmem:[%s4 + $0x18] sm:$0xff]
    %115 = vset.pattern.permute.xlu0 0
    %116 = vperm.xlu0 %115, %v110
    %v117 = vpop.permute.xlu0 %116
    %120 = vset.pattern.permute.xlu0 0
    %121 = vperm.xlu0 %120, %v111
    %v122 = vpop.permute.xlu0 %121
    %125 = vset.pattern.permute.xlu0 0
    %126 = vperm.xlu0 %125, %v112
    %v127 = vpop.permute.xlu0 %126
    %130 = vset.pattern.permute.xlu0 0
    %131 = vperm.xlu0 %130, %v113
    %v132 = vpop.permute.xlu0 %131
    %vm134 = vcmask 261120
    %v136 = vsel %vm134, %v106, 0
    %v139 = vsel %vm134, %v107, 0
    %v142 = vsel %vm134, %v108, 0
    %v145 = vsel %vm134, %v109, 0
    %147 = vmatpush.msra.mxu0 0.0
    %148 = vmatpush.msra.mxu0 0.0
    %149 = vmatpush.msra.mxu0 0.0
    %150 = vmatpush.msra.mxu0 0.0
    %151 = vmatpush.msra.mxu0 0.0
    %152 = vmatpush.msra.mxu0 0.0
    %153 = vmatpush.msra.mxu0 0.0
    %154 = vmatpush.msra.mxu0 0.0
    %155 = vmatpush.msra.mxu0 0.0
    %156 = vmatpush.msra.mxu0 0.0
    %157 = vmatpush.msra.mxu0 0.0
    %158 = vmatpush.msra.mxu0 0.0
    %159 = vmatpush.msra.mxu0 %v105
    %160 = vmatpush.msra.mxu0 %v104
    %161 = vmatpush.msra.mxu0 %v103
    %162 = vmatpush.msra.mxu0 %v102
    %163 = vmatmul.f32.gmra.mxu0 %v136
    %v164 = vpop.f32.mrf.mxu0
    %v165 = vadd.f32 %v117, %v164
    %166 = vmatmul.f32.gmra.mxu0 %v139
    %v167 = vpop.f32.mrf.mxu0
    %v168 = vadd.f32 %v122, %v167
    %169 = vmatmul.f32.gmra.mxu0 %v142
    %v170 = vpop.f32.mrf.mxu0
    %v171 = vadd.f32 %v127, %v170
    %172 = vmatmul.f32.gmra.mxu0 %v145
    %v173 = vpop.f32.mrf.mxu0
    %v174 = vadd.f32 %v132, %v173
    %175 = vdwg.mxu0
    %v176 = vmax.f32 %v165, 0.0
    %v177 = vmax.f32 %v168, 0.0
    %v178 = vmax.f32 %v171, 0.0
    %v179 = vmax.f32 %v174, 0.0
    %v180 = vld [vmem:[%s5] sm:$0xff]
    %v181 = vld [vmem:[%s5 + $0x8] sm:$0xff]
    %v182 = vld [vmem:[%s6] sm:$0xff]
    %v183 = vld [vmem:[%s6 + $0x8] sm:$0xff]
    %v185 = vsel %vm60, %v182, 0
    %v188 = vsel %vm60, %v183, 0
    %190 = vmatpush.msra.mxu0 0.0
    %191 = vmatpush.msra.mxu0 0.0
    %192 = vmatpush.msra.mxu0 0.0
    %193 = vmatpush.msra.mxu0 0.0
    %194 = vmatpush.msra.mxu0 0.0
    %195 = vmatpush.msra.mxu0 0.0
    %196 = vmatpush.msra.mxu0 0.0
    %197 = vmatpush.msra.mxu0 0.0
    %198 = vmatpush.msra.mxu0 0.0
    %199 = vmatpush.msra.mxu0 0.0
    %200 = vmatpush.msra.mxu0 0.0
    %201 = vmatpush.msra.mxu0 0.0
    %202 = vmatpush.msra.mxu0 0.0
    %203 = vmatpush.msra.mxu0 0.0
    %204 = vmatpush.msra.mxu0 %v31
    %205 = vmatpush.msra.mxu0 %v30
    %206 = vmatmul.f32.gmra.mxu0 %v185
    %v207 = vpop.f32.mrf.mxu0
    %v208 = vadd.f32 0.0, %v207
    %209 = vmatmul.f32.gmra.mxu0 %v188
    %v210 = vpop.f32.mrf.mxu0
    %v211 = vadd.f32 0.0, %v210
    %212 = vdwg.mxu0
    %v214 = vsel %vm134, %v180, 0
    %v217 = vsel %vm134, %v181, 0
    %219 = vmatpush.msra.mxu0 0.0
    %220 = vmatpush.msra.mxu0 0.0
    %221 = vmatpush.msra.mxu0 0.0
    %222 = vmatpush.msra.mxu0 0.0
    %223 = vmatpush.msra.mxu0 0.0
    %224 = vmatpush.msra.mxu0 0.0
    %225 = vmatpush.msra.mxu0 0.0
    %226 = vmatpush.msra.mxu0 0.0
    %227 = vmatpush.msra.mxu0 0.0
    %228 = vmatpush.msra.mxu0 0.0
    %229 = vmatpush.msra.mxu0 0.0
    %230 = vmatpush.msra.mxu0 0.0
    %231 = vmatpush.msra.mxu0 %v179
    %232 = vmatpush.msra.mxu0 %v178
    %233 = vmatpush.msra.mxu0 %v177
    %234 = vmatpush.msra.mxu0 %v176
    %235 = vmatmul.f32.gmra.mxu0 %v214
    %v236 = vpop.f32.mrf.mxu0
    %v237 = vadd.f32 %v208, %v236
    %238 = vmatmul.f32.gmra.mxu0 %v217
    %v239 = vpop.f32.mrf.mxu0
    %v240 = vadd.f32 %v211, %v239
    %241 = vdwg.mxu0
    %v242 = vld [vmem:[%s7] sm:$0xff]
    %v243 = vld [vmem:[%s7 + $0x8] sm:$0xff]
    %245 = vset.pattern.permute.xlu0 0
    %246 = vperm.xlu0 %245, %v242
    %v247 = vpop.permute.xlu0 %246
    %250 = vset.pattern.permute.xlu0 0
    %251 = vperm.xlu0 %250, %v243
    %v252 = vpop.permute.xlu0 %251
    %v254 = vadd.f32 %v237, %v247
    %v255 = vadd.f32 %v240, %v252
    %256 = vst.msk [vmem:[#allocation2] sm:$0xff] %vm60, %v254
    %257 = vst.msk [vmem:[#allocation2 + $0x8] sm:$0xff] %vm60, %v255
    // Predicated region
    $region34: #{tpu_custom_call.1} parent=1 // pred_check
      _
    $region35: #{tpu_custom_call.1} parent=1 // pred_check_branch
      %259 = sbr.rel (0) target = $region37
    $region36: #{tpu_custom_call.1} parent=1 // pred_region
      %261 = vsyncadd [#allocation3], 0
      %s262 = sshll.u32 [#allocation2], 4
      %s263 = int_to_ptr.vmem [resolvable:$true] %s262
      %s264 = sshll.u32 %s8, 4
      %s265 = int_to_ptr.hbm [resolvable:$true] %s264
      %270 = dma.vmem_to_hbm [thread:$0]  %s263, 256, %s265, [#allocation3], 128, 128, 8
    $region37: #{tpu_custom_call.1} parent=1 // pred_fallthru
      _
    // Predicated region
    $region38: #{tpu_custom_call.1} parent=1 // pred_check
      _
    $region39: #{tpu_custom_call.1} parent=1 // pred_check_branch
      %272 = sbr.rel (0) target = $region41
    $region40: #{tpu_custom_call.1} parent=1 // pred_region
      %274 = dma.done [#allocation3], 256
    $region41: #{tpu_custom_call.1} parent=1 // pred_fallthru
      _
    %275 = vsyncpa [#allocation3], 1

</llo_original>
